<compile_context>
chip_gen: v6e
topology: v6e:2x2x1
jax: 0.10.0
libtpu: 0.0.40
codegen_flags: <defaults>
</compile_context>

<pallas_src>
import functools
import math

import jax
import jax.numpy as jnp
from jax.experimental import pallas as pl
from jax.experimental.pallas import tpu as pltpu


# ---------------------------------------------------------------------------
# Host-side parameter packing: 2 slabs + static slicing metadata
# ---------------------------------------------------------------------------

def pack_params(params):
    """Fold all weights into one row-stacked slab and all biases into one slab.

    Returns (w_slab, b_slab, conv_meta, enc_meta, dec_meta) where each meta is a
    tuple of (row_offset, rows, cols) static slicing descriptors.  Row offsets
    are kept 8-aligned (sublane tile) and columns are padded to the widest layer.
    """
    groups = [params["conv"], params["encoder"], params["decoder"]]
    flat = [wb for g in groups for wb in g]
    wmax = max(int(w.shape[1]) for w, _ in flat)

    w_blocks, b_blocks, metas = [], [], []
    off = 0
    for (w, b) in flat:
        r, c = int(w.shape[0]), int(w.shape[1])
        r_pad = -(-r // 8) * 8                       # keep offsets sublane-aligned
        w_blocks.append(jnp.zeros((r_pad, wmax), jnp.float32).at[:r, :c].set(w))
        b_blocks.append(jnp.zeros((1, wmax), jnp.float32).at[:, :c].set(b))
        metas.append((off, r, c))
        off += r_pad

    extra = -(-len(flat) // 8) * 8 - len(flat)       # pad bias slab rows to 8
    if extra:
        b_blocks.append(jnp.zeros((extra, wmax), jnp.float32))

    w_slab = jnp.concatenate(w_blocks, axis=0)
    b_slab = jnp.concatenate(b_blocks, axis=0)

    nc, ne = len(params["conv"]), len(params["encoder"])
    conv_meta = tuple(metas[:nc])
    enc_meta = tuple(metas[nc:nc + ne])
    dec_meta = tuple(metas[nc + ne:])
    return w_slab, b_slab, conv_meta, enc_meta, dec_meta


# ---------------------------------------------------------------------------
# Fused forward-pass kernel
# ---------------------------------------------------------------------------

def _make_fused_kernel(num_nodes, in_features, conv_meta, enc_meta, dec_meta,
                       matmul_dtype):
    """Build the fused kernel for a fixed (static) network structure."""
    N, F = num_nodes, in_features

    def dotf(lhs, rhs):
        # Matmul operands optionally cast (bf16 on v6e/v7x); accumulate in f32.
        return jnp.dot(lhs.astype(matmul_dtype), rhs.astype(matmul_dtype),
                       preferred_element_type=jnp.float32)

    def kernel(graph_ref, pool_ref, w_ref, b_ref, out_ref):
        a = graph_ref[:, :N]                 # A_hat   [N, N]
        x = graph_ref[:, N:N + F]            # node X  [N, F]

        def read_w(meta):
            off, rows, cols = meta
            return w_ref[off:off + rows, :cols]

        bias_idx = [0]

        def read_b(cols):
            i = bias_idx[0]
            bias_idx[0] += 1
            return b_ref[i:i + 1, :cols]     # (1, cols), broadcasts over rows

        # ---- dense-GCN stack: h_new = relu(A @ (h @ W) + b), cumulative concat
        # (max concat width 2^(L-1)*H = 64 <= 128 lanes -> stays in one lane slab,
        #  so a single wide-K dot per layer; no piece-wise decomposition).
        layer_out = []
        h = x
        for meta in conv_meta:
            cols = meta[2]
            h_new = jnp.maximum(dotf(a, dotf(h, read_w(meta))) + read_b(cols), 0.0)
            h = jnp.concatenate(layer_out + [h_new], axis=1) if layer_out else h_new
            layer_out.append(h)

        # ---- encoder MLP (Linear + ReLU each, incl. output activation) --------
        for meta in enc_meta:
            h = jnp.maximum(dotf(h, read_w(meta)) + read_b(meta[2]), 0.0)

        # ---- scatter_mean over batch, expressed as P @ H -----------------------
        g = dotf(pool_ref[...], h)

        # ---- decoder MLP (ReLU on all but the last layer) ----------------------
        for k, meta in enumerate(dec_meta):
            g = dotf(g, read_w(meta)) + read_b(meta[2])
            if k < len(dec_meta) - 1:
                g = jnp.maximum(g, 0.0)

        out_ref[...] = g.astype(out_ref.dtype)

    return kernel


@functools.partial(
    jax.jit, static_argnames=("conv_meta", "enc_meta", "dec_meta", "matmul_dtype"))
def dense_gnn_forward(x, a_hat, pool_mat, w_slab, b_slab, *,
                      conv_meta, enc_meta, dec_meta, matmul_dtype=jnp.float32):
    """Single fused, jitted pallas_call over the whole forward pass (4 DMAs in)."""
    num_nodes, in_features = x.shape
    num_graphs = pool_mat.shape[0]
    num_classes = dec_meta[-1][2]

    # One lane-dense node slab -> one DMA for [A_hat | X].
    graph_slab = jnp.concatenate([a_hat, x], axis=1)

    kernel = _make_fused_kernel(num_nodes, in_features, conv_meta, enc_meta,
                                dec_meta, matmul_dtype)
    vmem = pl.BlockSpec(memory_space=pltpu.MemorySpace.VMEM)
    # TODO(synk): pad/transpose the output to a lane-dense slab if num_classes or
    #             num_graphs ever scales; irrelevant at the current 2x3 output.
    return pl.pallas_call(
        kernel,
        in_specs=[vmem, vmem, vmem, vmem],
        out_specs=vmem,
        out_shape=jax.ShapeDtypeStruct((num_graphs, num_classes), jnp.float32),
    )(graph_slab, pool_mat, w_slab, b_slab)


# ---------------------------------------------------------------------------
# Parameter init (deterministic, in-script)
# ---------------------------------------------------------------------------

def _glorot(key, shape):
    fan_in, fan_out = shape
    limit = math.sqrt(6.0 / (fan_in + fan_out))
    return jax.random.uniform(key, shape, jnp.float32, -limit, limit)


def init_params(key, in_features, num_hiddens, num_layers,
                encoder_channels, decoder_channels, num_classes):
    params = {"conv": [], "encoder": [], "decoder": []}

    # Layer 0: in_features -> H; layer i>0 consumes the 2^(i-1)*H-wide concat.
    conv_in = [in_features] + [2 ** (i - 1) * num_hiddens for i in range(1, num_layers)]
    for fin in conv_in:
        key, kw, kb = jax.random.split(key, 3)
        params["conv"].append((
            _glorot(kw, (fin, num_hiddens)),
            jax.random.uniform(kb, (1, num_hiddens), jnp.float32, -0.1, 0.1),
        ))

    encoder_in = 2 ** (num_layers - 1) * num_hiddens
    enc_dims = [encoder_in] + encoder_channels
    for fin, fout in zip(enc_dims[:-1], enc_dims[1:]):
        key, kw, kb = jax.random.split(key, 3)
        params["encoder"].append((
            _glorot(kw, (fin, fout)),
            jax.random.uniform(kb, (1, fout), jnp.float32, -0.1, 0.1),
        ))

    dec_dims = [encoder_channels[-1]] + decoder_channels + [num_classes]
    for fin, fout in zip(dec_dims[:-1], dec_dims[1:]):
        key, kw, kb = jax.random.split(key, 3)
        params["decoder"].append((
            _glorot(kw, (fin, fout)),
            jax.random.uniform(kb, (1, fout), jnp.float32, -0.1, 0.1),
        ))
    return params


# ---------------------------------------------------------------------------
# Pure-JAX reference (explicit concatenation) for correctness checking
# ---------------------------------------------------------------------------

def reference_forward(params, x, a_hat, pool_mat):
    layer_out = []
    h = x
    for (w, b) in params["conv"]:
        h_new = jax.nn.relu(a_hat @ (h @ w) + b)
        h = jnp.concatenate(layer_out + [h_new], axis=1)
        layer_out.append(h)
    for (w, b) in params["encoder"]:
        h = jax.nn.relu(h @ w + b)
    g = pool_mat @ h
    dec = params["decoder"]
    for i, (w, b) in enumerate(dec):
        g = g @ w + b
        if i < len(dec) - 1:
            g = jax.nn.relu(g)
    return g


# ---------------------------------------------------------------------------
# Graph construction glue (plain JAX)
# ---------------------------------------------------------------------------

def build_graph(nodes_per_graph, num_graphs):
    edges = []
    for g in range(num_graphs):
        base = g * nodes_per_graph
        for i in range(nodes_per_graph):
            edges.append((base + i, base + (i + 1) % nodes_per_graph))
    edge_index = jnp.array(edges, dtype=jnp.int32).T      # [2, E]
    batch = jnp.repeat(jnp.arange(num_graphs, dtype=jnp.int32), nodes_per_graph)
    return edge_index, batch


def normalized_adjacency(edge_index, num_nodes):
    a = jnp.zeros((num_nodes, num_nodes), jnp.float32)
    src, dst = edge_index
    a = a.at[src, dst].set(1.0)
    a = a.at[dst, src].set(1.0)                            # undirected
    a = a + jnp.eye(num_nodes, dtype=jnp.float32)          # self loops
    d_inv_sqrt = 1.0 / jnp.sqrt(a.sum(axis=1))
    return a * d_inv_sqrt[:, None] * d_inv_sqrt[None, :]   # D^-1/2 (A+I) D^-1/2


def mean_pool_matrix(batch, num_graphs):
    onehot = (batch[None, :] == jnp.arange(num_graphs, dtype=jnp.int32)[:, None])
    onehot = onehot.astype(jnp.float32)
    return onehot / onehot.sum(axis=1, keepdims=True)      # scatter_mean as matmul


# ---------------------------------------------------------------------------

if __name__ == "__main__":
    key = jax.random.PRNGKey(0)

    # Module hyper-parameters (small, consistent with the PyTorch __init__).
    in_features = 8
    num_hiddens = 16
    num_layers = 3
    encoder_channels = [32, 32]
    decoder_channels = [16]
    num_classes = 3          # > 1, so no final squeeze

    nodes_per_graph = 8
    num_graphs = 2
    num_nodes = nodes_per_graph * num_graphs

    key, kx, kp = jax.random.split(key, 3)
    x = jax.random.normal(kx, (num_nodes, in_features), jnp.float32)
    edge_index, batch = build_graph(nodes_per_graph, num_graphs)
    a_hat = normalized_adjacency(edge_index, num_nodes)
    pool_mat = mean_pool_matrix(batch, num_graphs)

    params = init_params(kp, in_features, num_hiddens, num_layers,
                         encoder_channels, decoder_channels, num_classes)

    # Pack once (weights are static) -> 2 parameter DMAs per forward call.
    w_slab, b_slab, conv_meta, enc_meta, dec_meta = pack_params(params)

    ref = reference_forward(params, x, a_hat, pool_mat)

    # f32 path: same association as the reference; ~1e-5 match, assert at 1e-4.
    out = dense_gnn_forward(x, a_hat, pool_mat, w_slab, b_slab,
                            conv_meta=conv_meta, enc_meta=enc_meta,
                            dec_meta=dec_meta, matmul_dtype=jnp.float32)
    out = jax.block_until_ready(out)
    assert out.shape == (num_graphs, num_classes), out.shape
    assert jnp.allclose(out, ref, rtol=1e-4, atol=1e-4), "Pallas f32 != JAX reference"

    # bf16-operand path (MXU-native on v6e/v7x; elementwise stays f32 for v5e).
    out_bf16 = dense_gnn_forward(x, a_hat, pool_mat, w_slab, b_slab,
                                 conv_meta=conv_meta, enc_meta=enc_meta,
                                 dec_meta=dec_meta, matmul_dtype=jnp.bfloat16)
    out_bf16 = jax.block_until_ready(out_bf16)
    assert jnp.all(jnp.isfinite(out_bf16))
    assert jnp.allclose(out_bf16, ref, rtol=1e-1, atol=2e-1), \
        "Pallas bf16-operand path too far from f32 reference"

    print("KERNEL_OK")
</pallas_src>

<mosaic_0001>
module attributes {stable_mosaic.version = 11 : i64} {
  func.func @kernel(%arg0: memref<16x24xf32, #tpu.memory_space<vmem>>, %arg1: memref<2x16xf32, #tpu.memory_space<vmem>>, %arg2: memref<200x32xf32, #tpu.memory_space<vmem>>, %arg3: memref<8x32xf32, #tpu.memory_space<vmem>>, %arg4: memref<2x3xf32, #tpu.memory_space<vmem>>) attributes {dimension_semantics = [], scalar_prefetch = 0 : i64, scratch_operands = 0 : i64, tpu.core_type = #tpu.core_type<tc>} {
    %c0 = arith.constant 0 : index
    %c0_0 = arith.constant 0 : index
    %0 = vector.load %arg0[%c0, %c0_0] : memref<16x24xf32, #tpu.memory_space<vmem>>, vector<16x16xf32>
    %c0_1 = arith.constant 0 : index
    %c16 = arith.constant 16 : index
    %1 = vector.load %arg0[%c0_1, %c16] : memref<16x24xf32, #tpu.memory_space<vmem>>, vector<16x8xf32>
    %c0_2 = arith.constant 0 : index
    %c0_3 = arith.constant 0 : index
    %2 = vector.load %arg2[%c0_2, %c0_3] : memref<200x32xf32, #tpu.memory_space<vmem>>, vector<8x16xf32>
    %cst = arith.constant dense<0.000000e+00> : vector<16x16xf32>
    %3 = tpu.matmul %1, %2, %cst {dimension_numbers = #tpu.dot_dimension_numbers<[1], [0], [0], [1], [0, 0, 1, 1], [], []>} : vector<16x8xf32>, vector<8x16xf32>, vector<16x16xf32> -> vector<16x16xf32>
    %cst_4 = arith.constant dense<0.000000e+00> : vector<16x16xf32>
    %4 = tpu.matmul %0, %3, %cst_4 {dimension_numbers = #tpu.dot_dimension_numbers<[1], [0], [0], [1], [0, 0, 1, 1], [], []>} : vector<16x16xf32>, vector<16x16xf32>, vector<16x16xf32> -> vector<16x16xf32>
    %c0_5 = arith.constant 0 : index
    %c0_6 = arith.constant 0 : index
    %5 = vector.load %arg3[%c0_5, %c0_6] : memref<8x32xf32, #tpu.memory_space<vmem>>, vector<1x16xf32>
    %6 = vector.broadcast %5 : vector<1x16xf32> to vector<16x16xf32>
    %7 = arith.addf %4, %6 : vector<16x16xf32>
    %cst_7 = arith.constant 0.000000e+00 : f32
    %8 = vector.broadcast %cst_7 : f32 to vector<16x16xf32>
    %9 = arith.maximumf %7, %8 : vector<16x16xf32>
    %c8 = arith.constant 8 : index
    %c0_8 = arith.constant 0 : index
    %10 = vector.load %arg2[%c8, %c0_8] : memref<200x32xf32, #tpu.memory_space<vmem>>, vector<16x16xf32>
    %cst_9 = arith.constant dense<0.000000e+00> : vector<16x16xf32>
    %11 = tpu.matmul %9, %10, %cst_9 {dimension_numbers = #tpu.dot_dimension_numbers<[1], [0], [0], [1], [0, 0, 1, 1], [], []>} : vector<16x16xf32>, vector<16x16xf32>, vector<16x16xf32> -> vector<16x16xf32>
    %cst_10 = arith.constant dense<0.000000e+00> : vector<16x16xf32>
    %12 = tpu.matmul %0, %11, %cst_10 {dimension_numbers = #tpu.dot_dimension_numbers<[1], [0], [0], [1], [0, 0, 1, 1], [], []>} : vector<16x16xf32>, vector<16x16xf32>, vector<16x16xf32> -> vector<16x16xf32>
    %c1 = arith.constant 1 : index
    %c0_11 = arith.constant 0 : index
    %13 = vector.load %arg3[%c1, %c0_11] : memref<8x32xf32, #tpu.memory_space<vmem>>, vector<1x16xf32>
    %14 = vector.broadcast %13 : vector<1x16xf32> to vector<16x16xf32>
    %15 = arith.addf %12, %14 : vector<16x16xf32>
    %cst_12 = arith.constant 0.000000e+00 : f32
    %16 = vector.broadcast %cst_12 : f32 to vector<16x16xf32>
    %17 = arith.maximumf %15, %16 : vector<16x16xf32>
    %18 = tpu.concatenate %9, %17 in 1 : vector<16x16xf32>, vector<16x16xf32> -> vector<16x32xf32>
    %c24 = arith.constant 24 : index
    %c0_13 = arith.constant 0 : index
    %19 = vector.load %arg2[%c24, %c0_13] : memref<200x32xf32, #tpu.memory_space<vmem>>, vector<32x16xf32>
    %cst_14 = arith.constant dense<0.000000e+00> : vector<16x16xf32>
    %20 = tpu.matmul %18, %19, %cst_14 {dimension_numbers = #tpu.dot_dimension_numbers<[1], [0], [0], [1], [0, 0, 1, 1], [], []>} : vector<16x32xf32>, vector<32x16xf32>, vector<16x16xf32> -> vector<16x16xf32>
    %cst_15 = arith.constant dense<0.000000e+00> : vector<16x16xf32>
    %21 = tpu.matmul %0, %20, %cst_15 {dimension_numbers = #tpu.dot_dimension_numbers<[1], [0], [0], [1], [0, 0, 1, 1], [], []>} : vector<16x16xf32>, vector<16x16xf32>, vector<16x16xf32> -> vector<16x16xf32>
    %c2 = arith.constant 2 : index
    %c0_16 = arith.constant 0 : index
    %22 = vector.load %arg3[%c2, %c0_16] : memref<8x32xf32, #tpu.memory_space<vmem>>, vector<1x16xf32>
    %23 = vector.broadcast %22 : vector<1x16xf32> to vector<16x16xf32>
    %24 = arith.addf %21, %23 : vector<16x16xf32>
    %cst_17 = arith.constant 0.000000e+00 : f32
    %25 = vector.broadcast %cst_17 : f32 to vector<16x16xf32>
    %26 = arith.maximumf %24, %25 : vector<16x16xf32>
    %27 = tpu.concatenate %9, %18, %26 in 1 : vector<16x16xf32>, vector<16x32xf32>, vector<16x16xf32> -> vector<16x64xf32>
    %c56 = arith.constant 56 : index
    %c0_18 = arith.constant 0 : index
    %28 = vector.load %arg2[%c56, %c0_18] : memref<200x32xf32, #tpu.memory_space<vmem>>, vector<64x32xf32>
    %cst_19 = arith.constant dense<0.000000e+00> : vector<16x32xf32>
    %29 = tpu.matmul %27, %28, %cst_19 {dimension_numbers = #tpu.dot_dimension_numbers<[1], [0], [0], [1], [0, 0, 1, 1], [], []>} : vector<16x64xf32>, vector<64x32xf32>, vector<16x32xf32> -> vector<16x32xf32>
    %c3 = arith.constant 3 : index
    %c0_20 = arith.constant 0 : index
    %30 = vector.load %arg3[%c3, %c0_20] : memref<8x32xf32, #tpu.memory_space<vmem>>, vector<1x32xf32>
    %31 = vector.broadcast %30 : vector<1x32xf32> to vector<16x32xf32>
    %32 = arith.addf %29, %31 : vector<16x32xf32>
    %cst_21 = arith.constant 0.000000e+00 : f32
    %33 = vector.broadcast %cst_21 : f32 to vector<16x32xf32>
    %34 = arith.maximumf %32, %33 : vector<16x32xf32>
    %c120 = arith.constant 120 : index
    %c0_22 = arith.constant 0 : index
    %35 = vector.load %arg2[%c120, %c0_22] : memref<200x32xf32, #tpu.memory_space<vmem>>, vector<32x32xf32>
    %cst_23 = arith.constant dense<0.000000e+00> : vector<16x32xf32>
    %36 = tpu.matmul %34, %35, %cst_23 {dimension_numbers = #tpu.dot_dimension_numbers<[1], [0], [0], [1], [0, 0, 1, 1], [], []>} : vector<16x32xf32>, vector<32x32xf32>, vector<16x32xf32> -> vector<16x32xf32>
    %c4 = arith.constant 4 : index
    %c0_24 = arith.constant 0 : index
    %37 = vector.load %arg3[%c4, %c0_24] : memref<8x32xf32, #tpu.memory_space<vmem>>, vector<1x32xf32>
    %38 = vector.broadcast %37 : vector<1x32xf32> to vector<16x32xf32>
    %39 = arith.addf %36, %38 : vector<16x32xf32>
    %cst_25 = arith.constant 0.000000e+00 : f32
    %40 = vector.broadcast %cst_25 : f32 to vector<16x32xf32>
    %41 = arith.maximumf %39, %40 : vector<16x32xf32>
    %c0_26 = arith.constant 0 : index
    %c0_27 = arith.constant 0 : index
    %42 = vector.load %arg1[%c0_26, %c0_27] : memref<2x16xf32, #tpu.memory_space<vmem>>, vector<2x16xf32>
    %cst_28 = arith.constant dense<0.000000e+00> : vector<2x32xf32>
    %43 = tpu.matmul %42, %41, %cst_28 {dimension_numbers = #tpu.dot_dimension_numbers<[1], [0], [0], [1], [0, 0, 1, 1], [], []>} : vector<2x16xf32>, vector<16x32xf32>, vector<2x32xf32> -> vector<2x32xf32>
    %c152 = arith.constant 152 : index
    %c0_29 = arith.constant 0 : index
    %44 = vector.load %arg2[%c152, %c0_29] : memref<200x32xf32, #tpu.memory_space<vmem>>, vector<32x16xf32>
    %cst_30 = arith.constant dense<0.000000e+00> : vector<2x16xf32>
    %45 = tpu.matmul %43, %44, %cst_30 {dimension_numbers = #tpu.dot_dimension_numbers<[1], [0], [0], [1], [0, 0, 1, 1], [], []>} : vector<2x32xf32>, vector<32x16xf32>, vector<2x16xf32> -> vector<2x16xf32>
    %c5 = arith.constant 5 : index
    %c0_31 = arith.constant 0 : index
    %46 = vector.load %arg3[%c5, %c0_31] : memref<8x32xf32, #tpu.memory_space<vmem>>, vector<1x16xf32>
    %47 = vector.broadcast %46 : vector<1x16xf32> to vector<2x16xf32>
    %48 = arith.addf %45, %47 : vector<2x16xf32>
    %cst_32 = arith.constant 0.000000e+00 : f32
    %49 = vector.broadcast %cst_32 : f32 to vector<2x16xf32>
    %50 = arith.maximumf %48, %49 : vector<2x16xf32>
    %c184 = arith.constant 184 : index
    %c0_33 = arith.constant 0 : index
    %51 = vector.load %arg2[%c184, %c0_33] : memref<200x32xf32, #tpu.memory_space<vmem>>, vector<16x3xf32>
    %cst_34 = arith.constant dense<0.000000e+00> : vector<2x3xf32>
    %52 = tpu.matmul %50, %51, %cst_34 {dimension_numbers = #tpu.dot_dimension_numbers<[1], [0], [0], [1], [0, 0, 1, 1], [], []>} : vector<2x16xf32>, vector<16x3xf32>, vector<2x3xf32> -> vector<2x3xf32>
    %c6 = arith.constant 6 : index
    %c0_35 = arith.constant 0 : index
    %53 = vector.load %arg3[%c6, %c0_35] : memref<8x32xf32, #tpu.memory_space<vmem>>, vector<1x3xf32>
    %54 = vector.broadcast %53 : vector<1x3xf32> to vector<2x3xf32>
    %55 = arith.addf %52, %54 : vector<2x3xf32>
    %c0_36 = arith.constant 0 : index
    %c0_37 = arith.constant 0 : index
    %56 = vector.load %arg4[%c0_36, %c0_37] : memref<2x3xf32, #tpu.memory_space<vmem>>, vector<2x3xf32>
    tpu.vector_store %arg4[%c0_36, %c0_37], %55 {strides = array<i32>} : memref<2x3xf32, #tpu.memory_space<vmem>>, vector<2x3xf32>,
    return
  }
}

</mosaic_0001>

<llo_original>
// kernel: dense_gnn_forward.1
$region0: #{dense_gnn_forward.1}
  #allocation0 [shape = 'u32[]', space=smem, size = 0x4, offset = 0x4, fixed_abs, tag = 'smem constant byte address 0x4 - core index']
  #allocation1 [shape = 'u32[144,128]{1,0:T(1,128)}', space=vmem, size = 0x12000, scoped, tag = 'internal scratch']
  %s0 = inlined_call_operand.vmem [shape: f32[16,24], index: 0, kind: input, shape index: {}]
  %s1 = inlined_call_operand.vmem [shape: f32[2,16], index: 1, kind: input, shape index: {}]
  %s2 = inlined_call_operand.vmem [shape: f32[200,32], index: 2, kind: input, shape index: {}]
  %s3 = inlined_call_operand.vmem [shape: f32[8,32], index: 3, kind: input, shape index: {}]
  %s4 = inlined_call_operand.hbm [shape: f32[2,3], index: 4, kind: output, shape index: {}]
  %s5 = sld [smem:[#allocation0]]
  $region26: #{dense_gnn_forward.1} parent=0
    _
  %s7 = ssub.s32 1, %s5
  %s8 = scalar_select 0, %s7, %s5
  $region1: #{dense_gnn_forward.1} parent=0
    #allocation2 [shape = 'u8[1024]{0}', space=vmem, size = 0x400, scoped, tag = 'output window, operand 0, single buffered']
    #allocation3 [shape = 's32[1]{0}', space=sflag, size = 0x4, scoped, tag = 'scoped memory for dense_gnn_forward.1']
    %9 = vsyncpa [#allocation3], 0
    // Predicated region
    $region2: #{dense_gnn_forward.1} parent=1 // pred_check
      _
    $region3: #{dense_gnn_forward.1} parent=1 // pred_check_branch
      %11 = sbr.rel (0) target = $region5
    $region4: #{dense_gnn_forward.1} parent=1 // pred_region
      _
    $region5: #{dense_gnn_forward.1} parent=1 // pred_fallthru
      _
    // Predicated region
    $region6: #{dense_gnn_forward.1} parent=1 // pred_check
      _
    $region7: #{dense_gnn_forward.1} parent=1 // pred_check_branch
      %13 = sbr.rel (0) target = $region9
    $region8: #{dense_gnn_forward.1} parent=1 // pred_region
      _
    $region9: #{dense_gnn_forward.1} parent=1 // pred_fallthru
      _
    // Predicated region
    $region10: #{dense_gnn_forward.1} parent=1 // pred_check
      _
    $region11: #{dense_gnn_forward.1} parent=1 // pred_check_branch
      %15 = sbr.rel (0) target = $region13
    $region12: #{dense_gnn_forward.1} parent=1 // pred_region
      _
    $region13: #{dense_gnn_forward.1} parent=1 // pred_fallthru
      _
    // Predicated region
    $region14: #{dense_gnn_forward.1} parent=1 // pred_check
      _
    $region15: #{dense_gnn_forward.1} parent=1 // pred_check_branch
      %17 = sbr.rel (0) target = $region17
    $region16: #{dense_gnn_forward.1} parent=1 // pred_region
      _
    $region17: #{dense_gnn_forward.1} parent=1 // pred_fallthru
      _
    %v18 = vld [vmem:[%s0] sm:$0xff]
    %v19 = vld [vmem:[%s0 + $0x8] sm:$0xff]
    %v20 = vld [vmem:[%s2] sm:$0xff]
    %23 = vrot.lane.b32.xlu0 %v18, 112
    %v24 = vpop.permute.xlu0 %23
    %25 = vrot.lane.b32.xlu0 %v19, 112
    %v26 = vpop.permute.xlu0 %25
    %vm27 = vcmask 64512
    %v28 = vsel %vm27, %v24, 0
    %v30 = vsel %vm27, %v26, 0
    %32 = vmatprep.subr.mxu0 0.0
    %33 = vmatpush1.msra.mxu0 0.0
    %34 = vmatprep.subr.mxu0 0.0
    %35 = vmatpush1.msra.mxu0 0.0
    %36 = vmatprep.subr.mxu0 0.0
    %37 = vmatpush1.msra.mxu0 0.0
    %38 = vmatprep.subr.mxu0 0.0
    %39 = vmatpush1.msra.mxu0 0.0
    %40 = vmatprep.subr.mxu0 0.0
    %41 = vmatpush1.msra.mxu0 0.0
    %42 = vmatprep.subr.mxu0 0.0
    %43 = vmatpush1.msra.mxu0 0.0
    %44 = vmatprep.subr.mxu0 0.0
    %45 = vmatpush1.msra.mxu0 0.0
    %46 = vmatprep.subr.mxu0 0.0
    %47 = vmatpush1.msra.mxu0 0.0
    %48 = vmatprep.subr.mxu0 0.0
    %49 = vmatpush1.msra.mxu0 0.0
    %50 = vmatprep.subr.mxu0 0.0
    %51 = vmatpush1.msra.mxu0 0.0
    %52 = vmatprep.subr.mxu0 0.0
    %53 = vmatpush1.msra.mxu0 0.0
    %54 = vmatprep.subr.mxu0 0.0
    %55 = vmatpush1.msra.mxu0 0.0
    %56 = vmatprep.subr.mxu0 0.0
    %57 = vmatpush1.msra.mxu0 0.0
    %58 = vmatprep.subr.mxu0 0.0
    %59 = vmatpush1.msra.mxu0 0.0
    %60 = vmatprep.subr.mxu0 0.0
    %61 = vmatpush1.msra.mxu0 0.0
    %62 = vmatprep.subr.mxu0 0.0
    %63 = vmatpush1.msra.mxu0 %v20
    %64 = vmatprep.subr.mxu0 0.0
    %65 = vmatpush2.msra.mxu0 0.0
    %66 = vmatprep.subr.mxu0 0.0
    %67 = vmatpush2.msra.mxu0 0.0
    %68 = vmatprep.subr.mxu0 0.0
    %69 = vmatpush2.msra.mxu0 0.0
    %70 = vmatprep.subr.mxu0 0.0
    %71 = vmatpush2.msra.mxu0 0.0
    %72 = vmatprep.subr.mxu0 0.0
    %73 = vmatpush2.msra.mxu0 0.0
    %74 = vmatprep.subr.mxu0 0.0
    %75 = vmatpush2.msra.mxu0 0.0
    %76 = vmatprep.subr.mxu0 0.0
    %77 = vmatpush2.msra.mxu0 0.0
    %78 = vmatprep.subr.mxu0 0.0
    %79 = vmatpush2.msra.mxu0 0.0
    %80 = vmatprep.subr.mxu0 0.0
    %81 = vmatpush2.msra.mxu0 0.0
    %82 = vmatprep.subr.mxu0 0.0
    %83 = vmatpush2.msra.mxu0 0.0
    %84 = vmatprep.subr.mxu0 0.0
    %85 = vmatpush2.msra.mxu0 0.0
    %86 = vmatprep.subr.mxu0 0.0
    %87 = vmatpush2.msra.mxu0 0.0
    %88 = vmatprep.subr.mxu0 0.0
    %89 = vmatpush2.msra.mxu0 0.0
    %90 = vmatprep.subr.mxu0 0.0
    %91 = vmatpush2.msra.mxu0 0.0
    %92 = vmatprep.subr.mxu0 0.0
    %93 = vmatpush2.msra.mxu0 0.0
    %94 = vmatprep.subr.mxu0 0.0
    %95 = vmatpush2.msra.mxu0 0.0
    %96 = vmatprep.mubr.f32.mxu0 0.0
    %97 = vmatmul.mubr.f32.gmra.mxu0 %v28
    %v98 = vpop.f32.mrf.mxu0
    %v99 = vadd.f32 0.0, %v98
    %v100 = vpop.f32.mrf.mxu0
    %101 = vmatprep.mubr.f32.mxu0 0.0
    %102 = vmatmul.mubr.f32.gmra.mxu0 %v30
    %v103 = vpop.f32.mrf.mxu0
    %v104 = vadd.f32 0.0, %v103
    %v105 = vpop.f32.mrf.mxu0
    %106 = vdwg.mxu0
    %v107 = vld [vmem:[%s3] sm:$0x1]
    %v108 = vlaneseq
    %v109 = vshrl.u32 %v108, 7
    %v110 = vsub.s32 0, %v109
    %v111 = vrot.slane %v107, %v110
    %vm112 = vcmask 130048
    %v113 = vsel %vm112, %v18, 0
    %v115 = vsel %vm112, %v19, 0
    %117 = vmatprep.subr.mxu0 0.0
    %118 = vmatpush1.msra.mxu0 0.0
    %119 = vmatprep.subr.mxu0 0.0
    %120 = vmatpush1.msra.mxu0 0.0
    %121 = vmatprep.subr.mxu0 0.0
    %122 = vmatpush1.msra.mxu0 0.0
    %123 = vmatprep.subr.mxu0 0.0
    %124 = vmatpush1.msra.mxu0 0.0
    %125 = vmatprep.subr.mxu0 0.0
    %126 = vmatpush1.msra.mxu0 0.0
    %127 = vmatprep.subr.mxu0 0.0
    %128 = vmatpush1.msra.mxu0 0.0
    %129 = vmatprep.subr.mxu0 0.0
    %130 = vmatpush1.msra.mxu0 0.0
    %131 = vmatprep.subr.mxu0 0.0
    %132 = vmatpush1.msra.mxu0 0.0
    %133 = vmatprep.subr.mxu0 0.0
    %134 = vmatpush1.msra.mxu0 0.0
    %135 = vmatprep.subr.mxu0 0.0
    %136 = vmatpush1.msra.mxu0 0.0
    %137 = vmatprep.subr.mxu0 0.0
    %138 = vmatpush1.msra.mxu0 0.0
    %139 = vmatprep.subr.mxu0 0.0
    %140 = vmatpush1.msra.mxu0 0.0
    %141 = vmatprep.subr.mxu0 0.0
    %142 = vmatpush1.msra.mxu0 0.0
    %143 = vmatprep.subr.mxu0 0.0
    %144 = vmatpush1.msra.mxu0 0.0
    %145 = vmatprep.subr.mxu0 0.0
    %146 = vmatpush1.msra.mxu0 %v104
    %147 = vmatprep.subr.mxu0 0.0
    %148 = vmatpush1.msra.mxu0 %v99
    %149 = vmatprep.subr.mxu0 0.0
    %150 = vmatpush2.msra.mxu0 0.0
    %151 = vmatprep.subr.mxu0 0.0
    %152 = vmatpush2.msra.mxu0 0.0
    %153 = vmatprep.subr.mxu0 0.0
    %154 = vmatpush2.msra.mxu0 0.0
    %155 = vmatprep.subr.mxu0 0.0
    %156 = vmatpush2.msra.mxu0 0.0
    %157 = vmatprep.subr.mxu0 0.0
    %158 = vmatpush2.msra.mxu0 0.0
    %159 = vmatprep.subr.mxu0 0.0
    %160 = vmatpush2.msra.mxu0 0.0
    %161 = vmatprep.subr.mxu0 0.0
    %162 = vmatpush2.msra.mxu0 0.0
    %163 = vmatprep.subr.mxu0 0.0
    %164 = vmatpush2.msra.mxu0 0.0
    %165 = vmatprep.subr.mxu0 0.0
    %166 = vmatpush2.msra.mxu0 0.0
    %167 = vmatprep.subr.mxu0 0.0
    %168 = vmatpush2.msra.mxu0 0.0
    %169 = vmatprep.subr.mxu0 0.0
    %170 = vmatpush2.msra.mxu0 0.0
    %171 = vmatprep.subr.mxu0 0.0
    %172 = vmatpush2.msra.mxu0 0.0
    %173 = vmatprep.subr.mxu0 0.0
    %174 = vmatpush2.msra.mxu0 0.0
    %175 = vmatprep.subr.mxu0 0.0
    %176 = vmatpush2.msra.mxu0 0.0
    %177 = vmatprep.subr.mxu0 0.0
    %178 = vmatpush2.msra.mxu0 0.0
    %179 = vmatprep.subr.mxu0 0.0
    %180 = vmatpush2.msra.mxu0 0.0
    %181 = vmatprep.mubr.f32.mxu0 0.0
    %182 = vmatmul.mubr.f32.gmra.mxu0 %v113
    %v183 = vpop.f32.mrf.mxu0
    %v184 = vadd.f32 %v111, %v183
    %v185 = vpop.f32.mrf.mxu0
    %186 = vmatprep.mubr.f32.mxu0 0.0
    %187 = vmatmul.mubr.f32.gmra.mxu0 %v115
    %v188 = vpop.f32.mrf.mxu0
    %v189 = vadd.f32 %v111, %v188
    %v190 = vpop.f32.mrf.mxu0
    %191 = vdwg.mxu0
    %v192 = vmax.f32 %v184, 0.0
    %v193 = vmax.f32 %v189, 0.0
    %v194 = vld [vmem:[%s2 + $0x8] sm:$0xff]
    %v195 = vld [vmem:[%s2 + $0x10] sm:$0xff]
    %v197 = vsel %vm112, %v192, 0
    %v200 = vsel %vm112, %v193, 0
    %202 = vmatprep.subr.mxu0 0.0
    %203 = vmatpush1.msra.mxu0 0.0
    %204 = vmatprep.subr.mxu0 0.0
    %205 = vmatpush1.msra.mxu0 0.0
    %206 = vmatprep.subr.mxu0 0.0
    %207 = vmatpush1.msra.mxu0 0.0
    %208 = vmatprep.subr.mxu0 0.0
    %209 = vmatpush1.msra.mxu0 0.0
    %210 = vmatprep.subr.mxu0 0.0
    %211 = vmatpush1.msra.mxu0 0.0
    %212 = vmatprep.subr.mxu0 0.0
    %213 = vmatpush1.msra.mxu0 0.0
    %214 = vmatprep.subr.mxu0 0.0
    %215 = vmatpush1.msra.mxu0 0.0
    %216 = vmatprep.subr.mxu0 0.0
    %217 = vmatpush1.msra.mxu0 0.0
    %218 = vmatprep.subr.mxu0 0.0
    %219 = vmatpush1.msra.mxu0 0.0
    %220 = vmatprep.subr.mxu0 0.0
    %221 = vmatpush1.msra.mxu0 0.0
    %222 = vmatprep.subr.mxu0 0.0
    %223 = vmatpush1.msra.mxu0 0.0
    %224 = vmatprep.subr.mxu0 0.0
    %225 = vmatpush1.msra.mxu0 0.0
    %226 = vmatprep.subr.mxu0 0.0
    %227 = vmatpush1.msra.mxu0 0.0
    %228 = vmatprep.subr.mxu0 0.0
    %229 = vmatpush1.msra.mxu0 0.0
    %230 = vmatprep.subr.mxu0 0.0
    %231 = vmatpush1.msra.mxu0 %v195
    %232 = vmatprep.subr.mxu0 0.0
    %233 = vmatpush1.msra.mxu0 %v194
    %234 = vmatprep.subr.mxu0 0.0
    %235 = vmatpush2.msra.mxu0 0.0
    %236 = vmatprep.subr.mxu0 0.0
    %237 = vmatpush2.msra.mxu0 0.0
    %238 = vmatprep.subr.mxu0 0.0
    %239 = vmatpush2.msra.mxu0 0.0
    %240 = vmatprep.subr.mxu0 0.0
    %241 = vmatpush2.msra.mxu0 0.0
    %242 = vmatprep.subr.mxu0 0.0
    %243 = vmatpush2.msra.mxu0 0.0
    %244 = vmatprep.subr.mxu0 0.0
    %245 = vmatpush2.msra.mxu0 0.0
    %246 = vmatprep.subr.mxu0 0.0
    %247 = vmatpush2.msra.mxu0 0.0
    %248 = vmatprep.subr.mxu0 0.0
    %249 = vmatpush2.msra.mxu0 0.0
    %250 = vmatprep.subr.mxu0 0.0
    %251 = vmatpush2.msra.mxu0 0.0
    %252 = vmatprep.subr.mxu0 0.0
    %253 = vmatpush2.msra.mxu0 0.0
    %254 = vmatprep.subr.mxu0 0.0
    %255 = vmatpush2.msra.mxu0 0.0
    %256 = vmatprep.subr.mxu0 0.0
    %257 = vmatpush2.msra.mxu0 0.0
    %258 = vmatprep.subr.mxu0 0.0
    %259 = vmatpush2.msra.mxu0 0.0
    %260 = vmatprep.subr.mxu0 0.0
    %261 = vmatpush2.msra.mxu0 0.0
    %262 = vmatprep.subr.mxu0 0.0
    %263 = vmatpush2.msra.mxu0 0.0
    %264 = vmatprep.subr.mxu0 0.0
    %265 = vmatpush2.msra.mxu0 0.0
    %266 = vmatprep.mubr.f32.mxu0 0.0
    %267 = vmatmul.mubr.f32.gmra.mxu0 %v197
    %v268 = vpop.f32.mrf.mxu0
    %v269 = vadd.f32 0.0, %v268
    %v270 = vpop.f32.mrf.mxu0
    %271 = vmatprep.mubr.f32.mxu0 0.0
    %272 = vmatmul.mubr.f32.gmra.mxu0 %v200
    %v273 = vpop.f32.mrf.mxu0
    %v274 = vadd.f32 0.0, %v273
    %v275 = vpop.f32.mrf.mxu0
    %276 = vdwg.mxu0
    %v277 = vld [vmem:[%s3 + $0x1] sm:$0x1]
    %v278 = vlaneseq
    %v279 = vshrl.u32 %v278, 7
    %v280 = vsub.s32 0, %v279
    %v281 = vrot.slane %v277, %v280
    %282 = vmatprep.subr.mxu0 0.0
    %283 = vmatpush1.msra.mxu0 0.0
    %284 = vmatprep.subr.mxu0 0.0
    %285 = vmatpush1.msra.mxu0 0.0
    %286 = vmatprep.subr.mxu0 0.0
    %287 = vmatpush1.msra.mxu0 0.0
    %288 = vmatprep.subr.mxu0 0.0
    %289 = vmatpush1.msra.mxu0 0.0
    %290 = vmatprep.subr.mxu0 0.0
    %291 = vmatpush1.msra.mxu0 0.0
    %292 = vmatprep.subr.mxu0 0.0
    %293 = vmatpush1.msra.mxu0 0.0
    %294 = vmatprep.subr.mxu0 0.0
    %295 = vmatpush1.msra.mxu0 0.0
    %296 = vmatprep.subr.mxu0 0.0
    %297 = vmatpush1.msra.mxu0 0.0
    %298 = vmatprep.subr.mxu0 0.0
    %299 = vmatpush1.msra.mxu0 0.0
    %300 = vmatprep.subr.mxu0 0.0
    %301 = vmatpush1.msra.mxu0 0.0
    %302 = vmatprep.subr.mxu0 0.0
    %303 = vmatpush1.msra.mxu0 0.0
    %304 = vmatprep.subr.mxu0 0.0
    %305 = vmatpush1.msra.mxu0 0.0
    %306 = vmatprep.subr.mxu0 0.0
    %307 = vmatpush1.msra.mxu0 0.0
    %308 = vmatprep.subr.mxu0 0.0
    %309 = vmatpush1.msra.mxu0 0.0
    %310 = vmatprep.subr.mxu0 0.0
    %311 = vmatpush1.msra.mxu0 %v274
    %312 = vmatprep.subr.mxu0 0.0
    %313 = vmatpush1.msra.mxu0 %v269
    %314 = vmatprep.subr.mxu0 0.0
    %315 = vmatpush2.msra.mxu0 0.0
    %316 = vmatprep.subr.mxu0 0.0
    %317 = vmatpush2.msra.mxu0 0.0
    %318 = vmatprep.subr.mxu0 0.0
    %319 = vmatpush2.msra.mxu0 0.0
    %320 = vmatprep.subr.mxu0 0.0
    %321 = vmatpush2.msra.mxu0 0.0
    %322 = vmatprep.subr.mxu0 0.0
    %323 = vmatpush2.msra.mxu0 0.0
    %324 = vmatprep.subr.mxu0 0.0
    %325 = vmatpush2.msra.mxu0 0.0
    %326 = vmatprep.subr.mxu0 0.0
    %327 = vmatpush2.msra.mxu0 0.0
    %328 = vmatprep.subr.mxu0 0.0
    %329 = vmatpush2.msra.mxu0 0.0
    %330 = vmatprep.subr.mxu0 0.0
    %331 = vmatpush2.msra.mxu0 0.0
    %332 = vmatprep.subr.mxu0 0.0
    %333 = vmatpush2.msra.mxu0 0.0
    %334 = vmatprep.subr.mxu0 0.0
    %335 = vmatpush2.msra.mxu0 0.0
    %336 = vmatprep.subr.mxu0 0.0
    %337 = vmatpush2.msra.mxu0 0.0
    %338 = vmatprep.subr.mxu0 0.0
    %339 = vmatpush2.msra.mxu0 0.0
    %340 = vmatprep.subr.mxu0 0.0
    %341 = vmatpush2.msra.mxu0 0.0
    %342 = vmatprep.subr.mxu0 0.0
    %343 = vmatpush2.msra.mxu0 0.0
    %344 = vmatprep.subr.mxu0 0.0
    %345 = vmatpush2.msra.mxu0 0.0
    %346 = vmatprep.mubr.f32.mxu0 0.0
    %347 = vmatmul.mubr.f32.gmra.mxu0 %v113
    %v348 = vpop.f32.mrf.mxu0
    %v349 = vadd.f32 %v281, %v348
    %v350 = vpop.f32.mrf.mxu0
    %351 = vmatprep.mubr.f32.mxu0 0.0
    %352 = vmatmul.mubr.f32.gmra.mxu0 %v115
    %v353 = vpop.f32.mrf.mxu0
    %v354 = vadd.f32 %v281, %v353
    %v355 = vpop.f32.mrf.mxu0
    %356 = vdwg.mxu0
    %v357 = vmax.f32 %v349, 0.0
    %v358 = vmax.f32 %v354, 0.0
    %361 = vrot.lane.b32.xlu0 %v357, 16
    %v362 = vpop.permute.xlu0 %361
    %363 = vrot.lane.b32.xlu0 %v358, 16
    %v364 = vpop.permute.xlu0 %363
    %v367 = vsel %vm112, %v192, %v362
    %v368 = vsel %vm112, %v193, %v364
    %v369 = vld [vmem:[%s2 + $0x18] sm:$0xff]
    %v370 = vld [vmem:[%s2 + $0x20] sm:$0xff]
    %v371 = vld [vmem:[%s2 + $0x28] sm:$0xff]
    %v372 = vld [vmem:[%s2 + $0x30] sm:$0xff]
    %vm373 = vcmask 261120
    %v375 = vsel %vm373, %v367, 0
    %v378 = vsel %vm373, %v368, 0
    %380 = vmatprep.subr.mxu0 0.0
    %381 = vmatpush1.msra.mxu0 0.0
    %382 = vmatprep.subr.mxu0 0.0
    %383 = vmatpush1.msra.mxu0 0.0
    %384 = vmatprep.subr.mxu0 0.0
    %385 = vmatpush1.msra.mxu0 0.0
    %386 = vmatprep.subr.mxu0 0.0
    %387 = vmatpush1.msra.mxu0 0.0
    %388 = vmatprep.subr.mxu0 0.0
    %389 = vmatpush1.msra.mxu0 0.0
    %390 = vmatprep.subr.mxu0 0.0
    %391 = vmatpush1.msra.mxu0 0.0
    %392 = vmatprep.subr.mxu0 0.0
    %393 = vmatpush1.msra.mxu0 0.0
    %394 = vmatprep.subr.mxu0 0.0
    %395 = vmatpush1.msra.mxu0 0.0
    %396 = vmatprep.subr.mxu0 0.0
    %397 = vmatpush1.msra.mxu0 0.0
    %398 = vmatprep.subr.mxu0 0.0
    %399 = vmatpush1.msra.mxu0 0.0
    %400 = vmatprep.subr.mxu0 0.0
    %401 = vmatpush1.msra.mxu0 0.0
    %402 = vmatprep.subr.mxu0 0.0
    %403 = vmatpush1.msra.mxu0 0.0
    %404 = vmatprep.subr.mxu0 0.0
    %405 = vmatpush1.msra.mxu0 %v372
    %406 = vmatprep.subr.mxu0 0.0
    %407 = vmatpush1.msra.mxu0 %v371
    %408 = vmatprep.subr.mxu0 0.0
    %409 = vmatpush1.msra.mxu0 %v370
    %410 = vmatprep.subr.mxu0 0.0
    %411 = vmatpush1.msra.mxu0 %v369
    %412 = vmatprep.subr.mxu0 0.0
    %413 = vmatpush2.msra.mxu0 0.0
    %414 = vmatprep.subr.mxu0 0.0
    %415 = vmatpush2.msra.mxu0 0.0
    %416 = vmatprep.subr.mxu0 0.0
    %417 = vmatpush2.msra.mxu0 0.0
    %418 = vmatprep.subr.mxu0 0.0
    %419 = vmatpush2.msra.mxu0 0.0
    %420 = vmatprep.subr.mxu0 0.0
    %421 = vmatpush2.msra.mxu0 0.0
    %422 = vmatprep.subr.mxu0 0.0
    %423 = vmatpush2.msra.mxu0 0.0
    %424 = vmatprep.subr.mxu0 0.0
    %425 = vmatpush2.msra.mxu0 0.0
    %426 = vmatprep.subr.mxu0 0.0
    %427 = vmatpush2.msra.mxu0 0.0
    %428 = vmatprep.subr.mxu0 0.0
    %429 = vmatpush2.msra.mxu0 0.0
    %430 = vmatprep.subr.mxu0 0.0
    %431 = vmatpush2.msra.mxu0 0.0
    %432 = vmatprep.subr.mxu0 0.0
    %433 = vmatpush2.msra.mxu0 0.0
    %434 = vmatprep.subr.mxu0 0.0
    %435 = vmatpush2.msra.mxu0 0.0
    %436 = vmatprep.subr.mxu0 0.0
    %437 = vmatpush2.msra.mxu0 0.0
    %438 = vmatprep.subr.mxu0 0.0
    %439 = vmatpush2.msra.mxu0 0.0
    %440 = vmatprep.subr.mxu0 0.0
    %441 = vmatpush2.msra.mxu0 0.0
    %442 = vmatprep.subr.mxu0 0.0
    %443 = vmatpush2.msra.mxu0 0.0
    %444 = vmatprep.mubr.f32.mxu0 0.0
    %445 = vmatmul.mubr.f32.gmra.mxu0 %v375
    %v446 = vpop.f32.mrf.mxu0
    %v447 = vadd.f32 0.0, %v446
    %v448 = vpop.f32.mrf.mxu0
    %449 = vmatprep.mubr.f32.mxu0 0.0
    %450 = vmatmul.mubr.f32.gmra.mxu0 %v378
    %v451 = vpop.f32.mrf.mxu0
    %v452 = vadd.f32 0.0, %v451
    %v453 = vpop.f32.mrf.mxu0
    %454 = vdwg.mxu0
    %v455 = vld [vmem:[%s3 + $0x2] sm:$0x1]
    %v456 = vlaneseq
    %v457 = vshrl.u32 %v456, 7
    %v458 = vsub.s32 0, %v457
    %v459 = vrot.slane %v455, %v458
    %460 = vmatprep.subr.mxu0 0.0
    %461 = vmatpush1.msra.mxu0 0.0
    %462 = vmatprep.subr.mxu0 0.0
    %463 = vmatpush1.msra.mxu0 0.0
    %464 = vmatprep.subr.mxu0 0.0
    %465 = vmatpush1.msra.mxu0 0.0
    %466 = vmatprep.subr.mxu0 0.0
    %467 = vmatpush1.msra.mxu0 0.0
    %468 = vmatprep.subr.mxu0 0.0
    %469 = vmatpush1.msra.mxu0 0.0
    %470 = vmatprep.subr.mxu0 0.0
    %471 = vmatpush1.msra.mxu0 0.0
    %472 = vmatprep.subr.mxu0 0.0
    %473 = vmatpush1.msra.mxu0 0.0
    %474 = vmatprep.subr.mxu0 0.0
    %475 = vmatpush1.msra.mxu0 0.0
    %476 = vmatprep.subr.mxu0 0.0
    %477 = vmatpush1.msra.mxu0 0.0
    %478 = vmatprep.subr.mxu0 0.0
    %479 = vmatpush1.msra.mxu0 0.0
    %480 = vmatprep.subr.mxu0 0.0
    %481 = vmatpush1.msra.mxu0 0.0
    %482 = vmatprep.subr.mxu0 0.0
    %483 = vmatpush1.msra.mxu0 0.0
    %484 = vmatprep.subr.mxu0 0.0
    %485 = vmatpush1.msra.mxu0 0.0
    %486 = vmatprep.subr.mxu0 0.0
    %487 = vmatpush1.msra.mxu0 0.0
    %488 = vmatprep.subr.mxu0 0.0
    %489 = vmatpush1.msra.mxu0 %v452
    %490 = vmatprep.subr.mxu0 0.0
    %491 = vmatpush1.msra.mxu0 %v447
    %492 = vmatprep.subr.mxu0 0.0
    %493 = vmatpush2.msra.mxu0 0.0
    %494 = vmatprep.subr.mxu0 0.0
    %495 = vmatpush2.msra.mxu0 0.0
    %496 = vmatprep.subr.mxu0 0.0
    %497 = vmatpush2.msra.mxu0 0.0
    %498 = vmatprep.subr.mxu0 0.0
    %499 = vmatpush2.msra.mxu0 0.0
    %500 = vmatprep.subr.mxu0 0.0
    %501 = vmatpush2.msra.mxu0 0.0
    %502 = vmatprep.subr.mxu0 0.0
    %503 = vmatpush2.msra.mxu0 0.0
    %504 = vmatprep.subr.mxu0 0.0
    %505 = vmatpush2.msra.mxu0 0.0
    %506 = vmatprep.subr.mxu0 0.0
    %507 = vmatpush2.msra.mxu0 0.0
    %508 = vmatprep.subr.mxu0 0.0
    %509 = vmatpush2.msra.mxu0 0.0
    %510 = vmatprep.subr.mxu0 0.0
    %511 = vmatpush2.msra.mxu0 0.0
    %512 = vmatprep.subr.mxu0 0.0
    %513 = vmatpush2.msra.mxu0 0.0
    %514 = vmatprep.subr.mxu0 0.0
    %515 = vmatpush2.msra.mxu0 0.0
    %516 = vmatprep.subr.mxu0 0.0
    %517 = vmatpush2.msra.mxu0 0.0
    %518 = vmatprep.subr.mxu0 0.0
    %519 = vmatpush2.msra.mxu0 0.0
    %520 = vmatprep.subr.mxu0 0.0
    %521 = vmatpush2.msra.mxu0 0.0
    %522 = vmatprep.subr.mxu0 0.0
    %523 = vmatpush2.msra.mxu0 0.0
    %524 = vmatprep.mubr.f32.mxu0 0.0
    %525 = vmatmul.mubr.f32.gmra.mxu0 %v113
    %v526 = vpop.f32.mrf.mxu0
    %v527 = vadd.f32 %v459, %v526
    %v528 = vpop.f32.mrf.mxu0
    %529 = vmatprep.mubr.f32.mxu0 0.0
    %530 = vmatmul.mubr.f32.gmra.mxu0 %v115
    %v531 = vpop.f32.mrf.mxu0
    %v532 = vadd.f32 %v459, %v531
    %v533 = vpop.f32.mrf.mxu0
    %534 = vdwg.mxu0
    %v535 = vmax.f32 %v527, 0.0
    %v536 = vmax.f32 %v532, 0.0
    %537 = vrot.lane.b32.xlu0 %v367, 16
    %v538 = vpop.permute.xlu0 %537
    %539 = vrot.lane.b32.xlu0 %v368, 16
    %v540 = vpop.permute.xlu0 %539
    %545 = vrot.lane.b32.xlu0 %v535, 48
    %v546 = vpop.permute.xlu0 %545
    %547 = vrot.lane.b32.xlu0 %v536, 48
    %v548 = vpop.permute.xlu0 %547
    %v551 = vsel %vm112, %v192, %v538
    %v552 = vsel %vm112, %v193, %v540
    %vm553 = vcmask 392192
    %v554 = vsel %vm553, %v551, %v546
    %v555 = vsel %vm553, %v552, %v548
    %v556 = vld [vmem:[%s2 + $0x38] sm:$0xff]
    %v557 = vld [vmem:[%s2 + $0x40] sm:$0xff]
    %v558 = vld [vmem:[%s2 + $0x48] sm:$0xff]
    %v559 = vld [vmem:[%s2 + $0x50] sm:$0xff]
    %v560 = vld [vmem:[%s2 + $0x58] sm:$0xff]
    %v561 = vld [vmem:[%s2 + $0x60] sm:$0xff]
    %v562 = vld [vmem:[%s2 + $0x68] sm:$0xff]
    %v563 = vld [vmem:[%s2 + $0x70] sm:$0xff]
    %v564 = vld [vmem:[%s3 + $0x3] sm:$0x1]
    %v565 = vlaneseq
    %v566 = vshrl.u32 %v565, 7
    %v567 = vsub.s32 0, %v566
    %v568 = vrot.slane %v564, %v567
    %vm569 = vcmask 523264
    %v571 = vsel %vm569, %v554, 0
    %v574 = vsel %vm569, %v555, 0
    %576 = vmatprep.subr.mxu0 0.0
    %577 = vmatpush1.msra.mxu0 0.0
    %578 = vmatprep.subr.mxu0 0.0
    %579 = vmatpush1.msra.mxu0 0.0
    %580 = vmatprep.subr.mxu0 0.0
    %581 = vmatpush1.msra.mxu0 0.0
    %582 = vmatprep.subr.mxu0 0.0
    %583 = vmatpush1.msra.mxu0 0.0
    %584 = vmatprep.subr.mxu0 0.0
    %585 = vmatpush1.msra.mxu0 0.0
    %586 = vmatprep.subr.mxu0 0.0
    %587 = vmatpush1.msra.mxu0 0.0
    %588 = vmatprep.subr.mxu0 0.0
    %589 = vmatpush1.msra.mxu0 0.0
    %590 = vmatprep.subr.mxu0 0.0
    %591 = vmatpush1.msra.mxu0 0.0
    %592 = vmatprep.subr.mxu0 0.0
    %593 = vmatpush1.msra.mxu0 %v563
    %594 = vmatprep.subr.mxu0 0.0
    %595 = vmatpush1.msra.mxu0 %v562
    %596 = vmatprep.subr.mxu0 0.0
    %597 = vmatpush1.msra.mxu0 %v561
    %598 = vmatprep.subr.mxu0 0.0
    %599 = vmatpush1.msra.mxu0 %v560
    %600 = vmatprep.subr.mxu0 0.0
    %601 = vmatpush1.msra.mxu0 %v559
    %602 = vmatprep.subr.mxu0 0.0
    %603 = vmatpush1.msra.mxu0 %v558
    %604 = vmatprep.subr.mxu0 0.0
    %605 = vmatpush1.msra.mxu0 %v557
    %606 = vmatprep.subr.mxu0 0.0
    %607 = vmatpush1.msra.mxu0 %v556
    %608 = vmatprep.subr.mxu0 0.0
    %609 = vmatpush2.msra.mxu0 0.0
    %610 = vmatprep.subr.mxu0 0.0
    %611 = vmatpush2.msra.mxu0 0.0
    %612 = vmatprep.subr.mxu0 0.0
    %613 = vmatpush2.msra.mxu0 0.0
    %614 = vmatprep.subr.mxu0 0.0
    %615 = vmatpush2.msra.mxu0 0.0
    %616 = vmatprep.subr.mxu0 0.0
    %617 = vmatpush2.msra.mxu0 0.0
    %618 = vmatprep.subr.mxu0 0.0
    %619 = vmatpush2.msra.mxu0 0.0
    %620 = vmatprep.subr.mxu0 0.0
    %621 = vmatpush2.msra.mxu0 0.0
    %622 = vmatprep.subr.mxu0 0.0
    %623 = vmatpush2.msra.mxu0 0.0
    %624 = vmatprep.subr.mxu0 0.0
    %625 = vmatpush2.msra.mxu0 0.0
    %626 = vmatprep.subr.mxu0 0.0
    %627 = vmatpush2.msra.mxu0 0.0
    %628 = vmatprep.subr.mxu0 0.0
    %629 = vmatpush2.msra.mxu0 0.0
    %630 = vmatprep.subr.mxu0 0.0
    %631 = vmatpush2.msra.mxu0 0.0
    %632 = vmatprep.subr.mxu0 0.0
    %633 = vmatpush2.msra.mxu0 0.0
    %634 = vmatprep.subr.mxu0 0.0
    %635 = vmatpush2.msra.mxu0 0.0
    %636 = vmatprep.subr.mxu0 0.0
    %637 = vmatpush2.msra.mxu0 0.0
    %638 = vmatprep.subr.mxu0 0.0
    %639 = vmatpush2.msra.mxu0 0.0
    %640 = vmatprep.mubr.f32.mxu0 0.0
    %641 = vmatmul.mubr.f32.gmra.mxu0 %v571
    %v642 = vpop.f32.mrf.mxu0
    %v643 = vadd.f32 %v568, %v642
    %v644 = vpop.f32.mrf.mxu0
    %645 = vmatprep.mubr.f32.mxu0 0.0
    %646 = vmatmul.mubr.f32.gmra.mxu0 %v574
    %v647 = vpop.f32.mrf.mxu0
    %v648 = vadd.f32 %v568, %v647
    %v649 = vpop.f32.mrf.mxu0
    %650 = vdwg.mxu0
    %v651 = vmax.f32 %v643, 0.0
    %v652 = vmax.f32 %v648, 0.0
    %v653 = vld [vmem:[%s2 + $0x78] sm:$0xff]
    %v654 = vld [vmem:[%s2 + $0x80] sm:$0xff]
    %v655 = vld [vmem:[%s2 + $0x88] sm:$0xff]
    %v656 = vld [vmem:[%s2 + $0x90] sm:$0xff]
    %v657 = vld [vmem:[%s3 + $0x4] sm:$0x1]
    %v658 = vlaneseq
    %v659 = vshrl.u32 %v658, 7
    %v660 = vsub.s32 0, %v659
    %v661 = vrot.slane %v657, %v660
    %v663 = vsel %vm373, %v651, 0
    %v666 = vsel %vm373, %v652, 0
    %668 = vmatprep.subr.mxu0 0.0
    %669 = vmatpush1.msra.mxu0 0.0
    %670 = vmatprep.subr.mxu0 0.0
    %671 = vmatpush1.msra.mxu0 0.0
    %672 = vmatprep.subr.mxu0 0.0
    %673 = vmatpush1.msra.mxu0 0.0
    %674 = vmatprep.subr.mxu0 0.0
    %675 = vmatpush1.msra.mxu0 0.0
    %676 = vmatprep.subr.mxu0 0.0
    %677 = vmatpush1.msra.mxu0 0.0
    %678 = vmatprep.subr.mxu0 0.0
    %679 = vmatpush1.msra.mxu0 0.0
    %680 = vmatprep.subr.mxu0 0.0
    %681 = vmatpush1.msra.mxu0 0.0
    %682 = vmatprep.subr.mxu0 0.0
    %683 = vmatpush1.msra.mxu0 0.0
    %684 = vmatprep.subr.mxu0 0.0
    %685 = vmatpush1.msra.mxu0 0.0
    %686 = vmatprep.subr.mxu0 0.0
    %687 = vmatpush1.msra.mxu0 0.0
    %688 = vmatprep.subr.mxu0 0.0
    %689 = vmatpush1.msra.mxu0 0.0
    %690 = vmatprep.subr.mxu0 0.0
    %691 = vmatpush1.msra.mxu0 0.0
    %692 = vmatprep.subr.mxu0 0.0
    %693 = vmatpush1.msra.mxu0 %v656
    %694 = vmatprep.subr.mxu0 0.0
    %695 = vmatpush1.msra.mxu0 %v655
    %696 = vmatprep.subr.mxu0 0.0
    %697 = vmatpush1.msra.mxu0 %v654
    %698 = vmatprep.subr.mxu0 0.0
    %699 = vmatpush1.msra.mxu0 %v653
    %700 = vmatprep.subr.mxu0 0.0
    %701 = vmatpush2.msra.mxu0 0.0
    %702 = vmatprep.subr.mxu0 0.0
    %703 = vmatpush2.msra.mxu0 0.0
    %704 = vmatprep.subr.mxu0 0.0
    %705 = vmatpush2.msra.mxu0 0.0
    %706 = vmatprep.subr.mxu0 0.0
    %707 = vmatpush2.msra.mxu0 0.0
    %708 = vmatprep.subr.mxu0 0.0
    %709 = vmatpush2.msra.mxu0 0.0
    %710 = vmatprep.subr.mxu0 0.0
    %711 = vmatpush2.msra.mxu0 0.0
    %712 = vmatprep.subr.mxu0 0.0
    %713 = vmatpush2.msra.mxu0 0.0
    %714 = vmatprep.subr.mxu0 0.0
    %715 = vmatpush2.msra.mxu0 0.0
    %716 = vmatprep.subr.mxu0 0.0
    %717 = vmatpush2.msra.mxu0 0.0
    %718 = vmatprep.subr.mxu0 0.0
    %719 = vmatpush2.msra.mxu0 0.0
    %720 = vmatprep.subr.mxu0 0.0
    %721 = vmatpush2.msra.mxu0 0.0
    %722 = vmatprep.subr.mxu0 0.0
    %723 = vmatpush2.msra.mxu0 0.0
    %724 = vmatprep.subr.mxu0 0.0
    %725 = vmatpush2.msra.mxu0 0.0
    %726 = vmatprep.subr.mxu0 0.0
    %727 = vmatpush2.msra.mxu0 0.0
    %728 = vmatprep.subr.mxu0 0.0
    %729 = vmatpush2.msra.mxu0 0.0
    %730 = vmatprep.subr.mxu0 0.0
    %731 = vmatpush2.msra.mxu0 0.0
    %732 = vmatprep.mubr.f32.mxu0 0.0
    %733 = vmatmul.mubr.f32.gmra.mxu0 %v663
    %v734 = vpop.f32.mrf.mxu0
    %v735 = vadd.f32 %v661, %v734
    %v736 = vpop.f32.mrf.mxu0
    %737 = vmatprep.mubr.f32.mxu0 0.0
    %738 = vmatmul.mubr.f32.gmra.mxu0 %v666
    %v739 = vpop.f32.mrf.mxu0
    %v740 = vadd.f32 %v661, %v739
    %v741 = vpop.f32.mrf.mxu0
    %742 = vdwg.mxu0
    %v743 = vmax.f32 %v735, 0.0
    %v744 = vmax.f32 %v740, 0.0
    %v745 = vld [vmem:[%s1] sm:$0x3]
    %v747 = vsel %vm112, %v745, 0
    %749 = vmatprep.subr.mxu0 0.0
    %750 = vmatpush1.msra.mxu0 0.0
    %751 = vmatprep.subr.mxu0 0.0
    %752 = vmatpush1.msra.mxu0 0.0
    %753 = vmatprep.subr.mxu0 0.0
    %754 = vmatpush1.msra.mxu0 0.0
    %755 = vmatprep.subr.mxu0 0.0
    %756 = vmatpush1.msra.mxu0 0.0
    %757 = vmatprep.subr.mxu0 0.0
    %758 = vmatpush1.msra.mxu0 0.0
    %759 = vmatprep.subr.mxu0 0.0
    %760 = vmatpush1.msra.mxu0 0.0
    %761 = vmatprep.subr.mxu0 0.0
    %762 = vmatpush1.msra.mxu0 0.0
    %763 = vmatprep.subr.mxu0 0.0
    %764 = vmatpush1.msra.mxu0 0.0
    %765 = vmatprep.subr.mxu0 0.0
    %766 = vmatpush1.msra.mxu0 0.0
    %767 = vmatprep.subr.mxu0 0.0
    %768 = vmatpush1.msra.mxu0 0.0
    %769 = vmatprep.subr.mxu0 0.0
    %770 = vmatpush1.msra.mxu0 0.0
    %771 = vmatprep.subr.mxu0 0.0
    %772 = vmatpush1.msra.mxu0 0.0
    %773 = vmatprep.subr.mxu0 0.0
    %774 = vmatpush1.msra.mxu0 0.0
    %775 = vmatprep.subr.mxu0 0.0
    %776 = vmatpush1.msra.mxu0 0.0
    %777 = vmatprep.subr.mxu0 0.0
    %778 = vmatpush1.msra.mxu0 %v744
    %779 = vmatprep.subr.mxu0 0.0
    %780 = vmatpush1.msra.mxu0 %v743
    %781 = vmatprep.subr.mxu0 0.0
    %782 = vmatpush2.msra.mxu0 0.0
    %783 = vmatprep.subr.mxu0 0.0
    %784 = vmatpush2.msra.mxu0 0.0
    %785 = vmatprep.subr.mxu0 0.0
    %786 = vmatpush2.msra.mxu0 0.0
    %787 = vmatprep.subr.mxu0 0.0
    %788 = vmatpush2.msra.mxu0 0.0
    %789 = vmatprep.subr.mxu0 0.0
    %790 = vmatpush2.msra.mxu0 0.0
    %791 = vmatprep.subr.mxu0 0.0
    %792 = vmatpush2.msra.mxu0 0.0
    %793 = vmatprep.subr.mxu0 0.0
    %794 = vmatpush2.msra.mxu0 0.0
    %795 = vmatprep.subr.mxu0 0.0
    %796 = vmatpush2.msra.mxu0 0.0
    %797 = vmatprep.subr.mxu0 0.0
    %798 = vmatpush2.msra.mxu0 0.0
    %799 = vmatprep.subr.mxu0 0.0
    %800 = vmatpush2.msra.mxu0 0.0
    %801 = vmatprep.subr.mxu0 0.0
    %802 = vmatpush2.msra.mxu0 0.0
    %803 = vmatprep.subr.mxu0 0.0
    %804 = vmatpush2.msra.mxu0 0.0
    %805 = vmatprep.subr.mxu0 0.0
    %806 = vmatpush2.msra.mxu0 0.0
    %807 = vmatprep.subr.mxu0 0.0
    %808 = vmatpush2.msra.mxu0 0.0
    %809 = vmatprep.subr.mxu0 0.0
    %810 = vmatpush2.msra.mxu0 0.0
    %811 = vmatprep.subr.mxu0 0.0
    %812 = vmatpush2.msra.mxu0 0.0
    %813 = vmatprep.mubr.f32.mxu0 0.0
    %814 = vmatmul.mubr.f32.gmra.mxu0 %v747
    %v815 = vpop.f32.mrf.mxu0
    %v816 = vadd.f32 0.0, %v815
    %v817 = vpop.f32.mrf.mxu0
    %818 = vdwg.mxu0
    %v819 = vld [vmem:[%s2 + $0x98] sm:$0xff]
    %v820 = vld [vmem:[%s2 + $0xa0] sm:$0xff]
    %v821 = vld [vmem:[%s2 + $0xa8] sm:$0xff]
    %v822 = vld [vmem:[%s2 + $0xb0] sm:$0xff]
    %v823 = vld [vmem:[%s3 + $0x5] sm:$0x1]
    %v824 = vlaneseq
    %v825 = vshrl.u32 %v824, 7
    %v826 = vsub.s32 0, %v825
    %v827 = vrot.slane %v823, %v826
    %v829 = vsel %vm373, %v816, 0
    %831 = vmatprep.subr.mxu0 0.0
    %832 = vmatpush1.msra.mxu0 0.0
    %833 = vmatprep.subr.mxu0 0.0
    %834 = vmatpush1.msra.mxu0 0.0
    %835 = vmatprep.subr.mxu0 0.0
    %836 = vmatpush1.msra.mxu0 0.0
    %837 = vmatprep.subr.mxu0 0.0
    %838 = vmatpush1.msra.mxu0 0.0
    %839 = vmatprep.subr.mxu0 0.0
    %840 = vmatpush1.msra.mxu0 0.0
    %841 = vmatprep.subr.mxu0 0.0
    %842 = vmatpush1.msra.mxu0 0.0
    %843 = vmatprep.subr.mxu0 0.0
    %844 = vmatpush1.msra.mxu0 0.0
    %845 = vmatprep.subr.mxu0 0.0
    %846 = vmatpush1.msra.mxu0 0.0
    %847 = vmatprep.subr.mxu0 0.0
    %848 = vmatpush1.msra.mxu0 0.0
    %849 = vmatprep.subr.mxu0 0.0
    %850 = vmatpush1.msra.mxu0 0.0
    %851 = vmatprep.subr.mxu0 0.0
    %852 = vmatpush1.msra.mxu0 0.0
    %853 = vmatprep.subr.mxu0 0.0
    %854 = vmatpush1.msra.mxu0 0.0
    %855 = vmatprep.subr.mxu0 0.0
    %856 = vmatpush1.msra.mxu0 %v822
    %857 = vmatprep.subr.mxu0 0.0
    %858 = vmatpush1.msra.mxu0 %v821
    %859 = vmatprep.subr.mxu0 0.0
    %860 = vmatpush1.msra.mxu0 %v820
    %861 = vmatprep.subr.mxu0 0.0
    %862 = vmatpush1.msra.mxu0 %v819
    %863 = vmatprep.subr.mxu0 0.0
    %864 = vmatpush2.msra.mxu0 0.0
    %865 = vmatprep.subr.mxu0 0.0
    %866 = vmatpush2.msra.mxu0 0.0
    %867 = vmatprep.subr.mxu0 0.0
    %868 = vmatpush2.msra.mxu0 0.0
    %869 = vmatprep.subr.mxu0 0.0
    %870 = vmatpush2.msra.mxu0 0.0
    %871 = vmatprep.subr.mxu0 0.0
    %872 = vmatpush2.msra.mxu0 0.0
    %873 = vmatprep.subr.mxu0 0.0
    %874 = vmatpush2.msra.mxu0 0.0
    %875 = vmatprep.subr.mxu0 0.0
    %876 = vmatpush2.msra.mxu0 0.0
    %877 = vmatprep.subr.mxu0 0.0
    %878 = vmatpush2.msra.mxu0 0.0
    %879 = vmatprep.subr.mxu0 0.0
    %880 = vmatpush2.msra.mxu0 0.0
    %881 = vmatprep.subr.mxu0 0.0
    %882 = vmatpush2.msra.mxu0 0.0
    %883 = vmatprep.subr.mxu0 0.0
    %884 = vmatpush2.msra.mxu0 0.0
    %885 = vmatprep.subr.mxu0 0.0
    %886 = vmatpush2.msra.mxu0 0.0
    %887 = vmatprep.subr.mxu0 0.0
    %888 = vmatpush2.msra.mxu0 0.0
    %889 = vmatprep.subr.mxu0 0.0
    %890 = vmatpush2.msra.mxu0 0.0
    %891 = vmatprep.subr.mxu0 0.0
    %892 = vmatpush2.msra.mxu0 0.0
    %893 = vmatprep.subr.mxu0 0.0
    %894 = vmatpush2.msra.mxu0 0.0
    %895 = vmatprep.mubr.f32.mxu0 0.0
    %896 = vmatmul.mubr.f32.gmra.mxu0 %v829
    %v897 = vpop.f32.mrf.mxu0
    %v898 = vadd.f32 %v827, %v897
    %v899 = vpop.f32.mrf.mxu0
    %900 = vdwg.mxu0
    %v901 = vmax.f32 %v898, 0.0
    %v902 = vld [vmem:[%s2 + $0xb8] sm:$0xff]
    %v903 = vld [vmem:[%s2 + $0xc0] sm:$0xff]
    %v904 = vld [vmem:[%s3 + $0x6] sm:$0x1]
    %v905 = vlaneseq
    %v906 = vshrl.u32 %v905, 7
    %v907 = vsub.s32 0, %v906
    %v908 = vrot.slane %v904, %v907
    %v910 = vsel %vm112, %v901, 0
    %912 = vmatprep.subr.mxu0 0.0
    %913 = vmatpush1.msra.mxu0 0.0
    %914 = vmatprep.subr.mxu0 0.0
    %915 = vmatpush1.msra.mxu0 0.0
    %916 = vmatprep.subr.mxu0 0.0
    %917 = vmatpush1.msra.mxu0 0.0
    %918 = vmatprep.subr.mxu0 0.0
    %919 = vmatpush1.msra.mxu0 0.0
    %920 = vmatprep.subr.mxu0 0.0
    %921 = vmatpush1.msra.mxu0 0.0
    %922 = vmatprep.subr.mxu0 0.0
    %923 = vmatpush1.msra.mxu0 0.0
    %924 = vmatprep.subr.mxu0 0.0
    %925 = vmatpush1.msra.mxu0 0.0
    %926 = vmatprep.subr.mxu0 0.0
    %927 = vmatpush1.msra.mxu0 0.0
    %928 = vmatprep.subr.mxu0 0.0
    %929 = vmatpush1.msra.mxu0 0.0
    %930 = vmatprep.subr.mxu0 0.0
    %931 = vmatpush1.msra.mxu0 0.0
    %932 = vmatprep.subr.mxu0 0.0
    %933 = vmatpush1.msra.mxu0 0.0
    %934 = vmatprep.subr.mxu0 0.0
    %935 = vmatpush1.msra.mxu0 0.0
    %936 = vmatprep.subr.mxu0 0.0
    %937 = vmatpush1.msra.mxu0 0.0
    %938 = vmatprep.subr.mxu0 0.0
    %939 = vmatpush1.msra.mxu0 0.0
    %940 = vmatprep.subr.mxu0 0.0
    %941 = vmatpush1.msra.mxu0 %v903
    %942 = vmatprep.subr.mxu0 0.0
    %943 = vmatpush1.msra.mxu0 %v902
    %944 = vmatprep.subr.mxu0 0.0
    %945 = vmatpush2.msra.mxu0 0.0
    %946 = vmatprep.subr.mxu0 0.0
    %947 = vmatpush2.msra.mxu0 0.0
    %948 = vmatprep.subr.mxu0 0.0
    %949 = vmatpush2.msra.mxu0 0.0
    %950 = vmatprep.subr.mxu0 0.0
    %951 = vmatpush2.msra.mxu0 0.0
    %952 = vmatprep.subr.mxu0 0.0
    %953 = vmatpush2.msra.mxu0 0.0
    %954 = vmatprep.subr.mxu0 0.0
    %955 = vmatpush2.msra.mxu0 0.0
    %956 = vmatprep.subr.mxu0 0.0
    %957 = vmatpush2.msra.mxu0 0.0
    %958 = vmatprep.subr.mxu0 0.0
    %959 = vmatpush2.msra.mxu0 0.0
    %960 = vmatprep.subr.mxu0 0.0
    %961 = vmatpush2.msra.mxu0 0.0
    %962 = vmatprep.subr.mxu0 0.0
    %963 = vmatpush2.msra.mxu0 0.0
    %964 = vmatprep.subr.mxu0 0.0
    %965 = vmatpush2.msra.mxu0 0.0
    %966 = vmatprep.subr.mxu0 0.0
    %967 = vmatpush2.msra.mxu0 0.0
    %968 = vmatprep.subr.mxu0 0.0
    %969 = vmatpush2.msra.mxu0 0.0
    %970 = vmatprep.subr.mxu0 0.0
    %971 = vmatpush2.msra.mxu0 0.0
    %972 = vmatprep.subr.mxu0 0.0
    %973 = vmatpush2.msra.mxu0 0.0
    %974 = vmatprep.subr.mxu0 0.0
    %975 = vmatpush2.msra.mxu0 0.0
    %976 = vmatprep.mubr.f32.mxu0 0.0
    %977 = vmatmul.mubr.f32.gmra.mxu0 %v910
    %v978 = vpop.f32.mrf.mxu0
    %v979 = vadd.f32 %v908, %v978
    %v980 = vpop.f32.mrf.mxu0
    %981 = vdwg.mxu0
    %vm982 = vcmask 17408
    %983 = vst.msk [vmem:[#allocation2] sm:$0x3] %vm982, %v979
    // Predicated region
    $region18: #{dense_gnn_forward.1} parent=1 // pred_check
      _
    $region19: #{dense_gnn_forward.1} parent=1 // pred_check_branch
      %985 = sbr.rel (0) target = $region21
    $region20: #{dense_gnn_forward.1} parent=1 // pred_region
      %s987 = ssub.s32 32, 32
      %988 = vsyncadd [#allocation3], %s987
      %s990 = sshll.u32 [#allocation2], 4
      %s991 = int_to_ptr.vmem [resolvable:$true] %s990
      %993 = dma.vmem_to_hbm [thread:$0]  %s991, 32, %s4, [#allocation3]
    $region21: #{dense_gnn_forward.1} parent=1 // pred_fallthru
      _
    // Predicated region
    $region22: #{dense_gnn_forward.1} parent=1 // pred_check
      _
    $region23: #{dense_gnn_forward.1} parent=1 // pred_check_branch
      %995 = sbr.rel (0) target = $region25
    $region24: #{dense_gnn_forward.1} parent=1 // pred_region
      %996 = dma.done [#allocation3], 32
    $region25: #{dense_gnn_forward.1} parent=1 // pred_fallthru
      _
    %997 = vsyncpa [#allocation3], 1

</llo_original>
